<compile_context>
chip_gen: v7x
topology: tpu7x:2x2x1
jax: 0.10.0
libtpu: 0.0.40
codegen_flags: <defaults>
</compile_context>

<pallas_src>
import functools

import jax
import jax.numpy as jnp
from jax.experimental import pallas as pl
from jax.experimental.pallas import tpu as pltpu


def _rmsnorm_kernel(x_ref, w_ref, o_ref, *, eps):
    # Compute in float32 regardless of input dtype (matches torch .to(float32)).
    x = x_ref[...].astype(jnp.float32)
    variance = jnp.mean(x * x, axis=-1, keepdims=True)
    inv = jax.lax.rsqrt(variance + eps)
    # Match torch semantics: downcast the normalized activations back to the
    # input dtype *before* multiplying by the (possibly wider) weight.
    normed = (x * inv).astype(x_ref.dtype)
    o_ref[...] = (w_ref[...] * normed).astype(o_ref.dtype)


def _round_up(x, m):
    return (x + m - 1) // m * m


def _vmem_capacity_bytes():
    try:
        return int(pltpu.get_tpu_info().vmem_capacity_bytes)
    except Exception:
        # Conservative fallback: smallest per-core VMEM across generations (v7x).
        return 64 * 1024 * 1024


def _num_tensorcores():
    """Best-effort TensorCore-per-chip count (2 on v7x, else 1)."""
    try:
        info = pltpu.get_tpu_info()
        for attr in ("num_cores", "core_count", "num_tensorcores", "tensorcore_count"):
            v = getattr(info, attr, None)
            if v:
                return int(v)
    except Exception:
        pass
    try:
        kind = jax.devices()[0].device_kind.lower()
        if "v7" in kind:
            return 2
    except Exception:
        pass
    return 1


def _sublane_multiple(dtype):
    # Packed sublane count: 8 for 4-byte, 16 for 2-byte, 32 for 1-byte dtypes.
    itemsize = max(jnp.dtype(dtype).itemsize, 1)
    return 8 * max(1, 4 // itemsize)


# ~2-8 MiB of input per tile already reaches ~85% of the HBM roofline; larger
# tiles only add VMEM pressure and hurt v7x megacore balance.
_TARGET_TILE_INPUT_BYTES = 6 * 1024 * 1024


def _pick_tiling(rows, hidden, in_dtype, out_dtype):
    """Pick (row_tile, vmem_limit_bytes)."""
    in_bytes = jnp.dtype(in_dtype).itemsize
    out_bytes = jnp.dtype(out_dtype).itemsize

    vmem_cap = _vmem_capacity_bytes()
    # Pipelined VMEM per row: double-buffered input + output tiles plus up to
    # three tile-sized f32 temporaries Mosaic may materialize for the
    # upcast / x*x / x*inv chain.
    bytes_per_row = hidden * (2 * in_bytes + 2 * out_bytes + 3 * 4)
    vmem_rows = int(vmem_cap * 0.4) // max(bytes_per_row, 1)

    # Bandwidth target: cap the tile by input bytes, not by a fixed row count.
    bw_rows = _TARGET_TILE_INPUT_BYTES // max(hidden * in_bytes, 1)

    # Dtype-aware sublane rounding (both the input and output tiles use it).
    sublane = max(_sublane_multiple(in_dtype), _sublane_multiple(out_dtype), 8)

    row_tile = min(vmem_rows, bw_rows)
    row_tile = max(sublane, (row_tile // sublane) * sublane)
    # Never larger than the (sublane-rounded) problem itself.
    row_tile = min(row_tile, _round_up(rows, sublane))

    # Megacore (v7x): keep the step count a multiple of the TC count so the
    # 1-D "parallel" grid splits evenly; no-op on 1-TC chips (v5e/v6e) where
    # extra steps would only add per-step overhead.
    ncores = _num_tensorcores()
    steps = pl.cdiv(rows, row_tile)
    if ncores > 1 and steps > 1 and steps % ncores != 0:
        steps = _round_up(steps, ncores)
        row_tile = max(sublane, _round_up(pl.cdiv(rows, steps), sublane))

    vmem_limit = int(vmem_cap * 0.75)
    return row_tile, vmem_limit


def rmsnorm(hidden_states, weight, eps=1e-6, *, row_tile=None):
    """RMSNorm over the last axis, semantics matching DeepseekV3RMSNorm."""
    orig_shape = hidden_states.shape
    hidden = orig_shape[-1]
    x2d = hidden_states.reshape(-1, hidden)
    rows = x2d.shape[0]

    # Output dtype follows torch promotion: weight(dtype) * x(input_dtype).
    out_dtype = jnp.promote_types(weight.dtype, hidden_states.dtype)
    in_bytes = jnp.dtype(hidden_states.dtype).itemsize
    out_bytes = jnp.dtype(out_dtype).itemsize
    w_bytes = jnp.dtype(weight.dtype).itemsize

    auto_tile, vmem_limit = _pick_tiling(rows, hidden, hidden_states.dtype, out_dtype)
    if row_tile is None:
        row_tile = auto_tile

    w2d = weight.reshape(1, hidden)

    # No pad/slice: non-divisible grid -> Pallas masks the trailing partial
    # block. Computation is strictly row-wise so overhang rows cannot
    # contaminate valid rows, and their stores are masked.
    grid = (pl.cdiv(rows, row_tile),)

    out = pl.pallas_call(
        functools.partial(_rmsnorm_kernel, eps=eps),
        out_shape=jax.ShapeDtypeStruct((rows, hidden), out_dtype),
        grid_spec=pltpu.PrefetchScalarGridSpec(
            num_scalar_prefetch=0,
            grid=grid,
            in_specs=[
                pl.BlockSpec((row_tile, hidden), lambda i: (i, 0)),
                pl.BlockSpec((1, hidden), lambda i: (0, 0)),
            ],
            out_specs=pl.BlockSpec((row_tile, hidden), lambda i: (i, 0)),
        ),
        compiler_params=pltpu.CompilerParams(
            dimension_semantics=("parallel",),
            vmem_limit_bytes=vmem_limit,
        ),
        cost_estimate=pl.CostEstimate(
            flops=4 * rows * hidden,
            transcendentals=rows,
            bytes_accessed=rows * hidden * (in_bytes + out_bytes) + hidden * w_bytes,
        ),
    )(x2d, w2d)

    return out.reshape(orig_shape)


def rmsnorm_ref(hidden_states, weight, eps=1e-6):
    """Pure-JAX reference mirroring the PyTorch forward."""
    input_dtype = hidden_states.dtype
    x = hidden_states.astype(jnp.float32)
    variance = jnp.mean(x * x, axis=-1, keepdims=True)
    x = x * jax.lax.rsqrt(variance + eps)
    return weight * x.astype(input_dtype)


if __name__ == "__main__":
    key = jax.random.PRNGKey(0)
    k1, k2, k3 = jax.random.split(key, 3)

    # Case 1: small, evenly tiled shape.
    batch, seq, hidden = 2, 8, 32
    x = jax.random.normal(k1, (batch, seq, hidden), dtype=jnp.float32)
    # Deterministic parameter init matching nn.Parameter(torch.ones(hidden_size)).
    weight = jnp.ones((hidden,), dtype=jnp.float32)

    out = jax.block_until_ready(rmsnorm(x, weight, eps=1e-6))
    ref = rmsnorm_ref(x, weight, eps=1e-6)
    assert out.shape == x.shape and out.dtype == ref.dtype
    assert jnp.allclose(out, ref, atol=1e-5, rtol=1e-5), "mismatch vs reference"

    # Case 2: rows not a multiple of the sublane/tile (masked trailing block).
    x2 = jax.random.normal(k2, (3, 5, hidden), dtype=jnp.float32)
    out2 = jax.block_until_ready(rmsnorm(x2, weight, eps=1e-6))
    ref2 = rmsnorm_ref(x2, weight, eps=1e-6)
    assert out2.shape == x2.shape
    assert jnp.allclose(out2, ref2, atol=1e-5, rtol=1e-5), "mismatch vs reference (ragged)"

    # Case 3: bf16 activations + f32 weight (16-sublane rounding, torch-style
    # promotion of the output dtype to f32).
    x3 = jax.random.normal(k3, (4, 10, hidden), dtype=jnp.bfloat16)
    out3 = jax.block_until_ready(rmsnorm(x3, weight, eps=1e-6))
    ref3 = rmsnorm_ref(x3, weight, eps=1e-6)
    assert out3.shape == x3.shape and out3.dtype == jnp.float32
    assert jnp.allclose(out3, ref3.astype(jnp.float32), atol=1e-2, rtol=1e-2), (
        "mismatch vs reference (bf16)")

    print("KERNEL_OK")
</pallas_src>

<mosaic_0001>
module attributes {stable_mosaic.version = 11 : i64} {
  func.func @_rmsnorm_kernel(%arg0: i32, %arg1: memref<16x32xf32, #tpu.memory_space<vmem>>, %arg2: memref<1x32xf32, #tpu.memory_space<vmem>>, %arg3: memref<16x32xf32, #tpu.memory_space<vmem>>) attributes {dimension_semantics = [#tpu.dimension_semantics<parallel>], iteration_bounds = array<i64: 1>, scalar_prefetch = 0 : i64, scratch_operands = 0 : i64, tpu.core_type = #tpu.core_type<tc>, window_params = [{transform_indices = @transform_0, window_bounds = array<i64: 16, 32>}, {pipeline_mode = #tpu.pipeline_mode<synchronous>, transform_indices = @transform_1, window_bounds = array<i64: 1, 32>}, {transform_indices = @transform_2, window_bounds = array<i64: 16, 32>}]} {
    %c0 = arith.constant 0 : index
    %c0_0 = arith.constant 0 : index
    %0 = vector.load %arg1[%c0, %c0_0] : memref<16x32xf32, #tpu.memory_space<vmem>>, vector<16x32xf32>
    %1 = arith.mulf %0, %0 : vector<16x32xf32>
    %cst = arith.constant dense<0.000000e+00> : vector<16xf32>
    %2 = vector.multi_reduction <add>, %1, %cst [1] : vector<16x32xf32> to vector<16xf32>
    %3 = vector.shape_cast %2 : vector<16xf32> to vector<16x1xf32>
    %cst_1 = arith.constant 3.200000e+01 : f32
    %4 = vector.broadcast %cst_1 : f32 to vector<16x1xf32>
    %5 = arith.divf %3, %4 : vector<16x1xf32>
    %cst_2 = arith.constant 9.99999997E-7 : f32
    %6 = vector.broadcast %cst_2 : f32 to vector<16x1xf32>
    %7 = arith.addf %5, %6 : vector<16x1xf32>
    %8 = math.rsqrt %7 : vector<16x1xf32>
    %9 = vector.broadcast %8 : vector<16x1xf32> to vector<16x32xf32>
    %10 = arith.mulf %0, %9 : vector<16x32xf32>
    %c0_3 = arith.constant 0 : index
    %c0_4 = arith.constant 0 : index
    %11 = vector.load %arg2[%c0_3, %c0_4] : memref<1x32xf32, #tpu.memory_space<vmem>>, vector<1x32xf32>
    %12 = vector.broadcast %11 : vector<1x32xf32> to vector<16x32xf32>
    %13 = arith.mulf %12, %10 : vector<16x32xf32>
    %c0_5 = arith.constant 0 : index
    %c0_6 = arith.constant 0 : index
    %14 = vector.load %arg3[%c0_5, %c0_6] : memref<16x32xf32, #tpu.memory_space<vmem>>, vector<16x32xf32>
    tpu.vector_store %arg3[%c0_5, %c0_6], %13 {strides = array<i32>} : memref<16x32xf32, #tpu.memory_space<vmem>>, vector<16x32xf32>,
    return
  }
  func.func @transform_0(%arg0: i32) -> (i32, i32) {
    %c0_i32 = arith.constant 0 : i32
    %c0_i32_0 = arith.constant 0 : i32
    return %arg0, %c0_i32 : i32, i32
  }
  func.func @transform_1(%arg0: i32) -> (i32, i32) {
    %c0_i32 = arith.constant 0 : i32
    %c0_i32_0 = arith.constant 0 : i32
    %c0_i32_1 = arith.constant 0 : i32
    return %c0_i32, %c0_i32_0 : i32, i32
  }
  func.func @transform_2(%arg0: i32) -> (i32, i32) {
    %c0_i32 = arith.constant 0 : i32
    %c0_i32_0 = arith.constant 0 : i32
    return %arg0, %c0_i32 : i32, i32
  }
}

</mosaic_0001>

<llo_original>
// kernel: tpu_custom_call.1
$region0: #{tpu_custom_call.1}
  #allocation0 [shape = 'u32[]', space=smem, size = 0x4, offset = 0x4, fixed_abs, tag = 'smem constant byte address 0x4 - core index']
  #allocation1 [shape = 'u32[144,128]{1,0:T(1,128)}', space=vmem, size = 0x12000, scoped, tag = 'internal scratch']
  %s0 = inlined_call_operand.hbm [shape: f32[16,32], index: 0, kind: input, shape index: {}]
  %s1 = inlined_call_operand.vmem [shape: f32[1,32], index: 1, kind: input, shape index: {}]
  %s2 = inlined_call_operand.hbm [shape: f32[16,32], index: 2, kind: output, shape index: {}]
  %s3 = sld [smem:[#allocation0]]
  $region22: #{tpu_custom_call.1} parent=0
    _
  %s5 = ssub.s32 1, %s3
  %s6 = scalar_select 0, %s5, %s3
  $region1: #{tpu_custom_call.1} parent=0
    #allocation2 [shape = 'u8[8192]{0}', space=vmem, size = 0x2000, scoped, tag = 'input window, operand 0, single buffered']
    #allocation3 [shape = 's32[1]{0}', space=sflag, size = 0x4, scoped, tag = 'scoped memory for tpu_custom_call.1']
    #allocation4 [shape = 's32[1]{0}', space=sflag, size = 0x4, scoped, tag = 'scoped memory for tpu_custom_call.1']
    #allocation5 [shape = 'u8[8192]{0}', space=vmem, size = 0x2000, scoped, tag = 'output window, operand 0, single buffered']
    %7 = vsyncpa [#allocation3], 0
    %8 = vsyncpa [#allocation4], 0
    // Predicated region
    $region2: #{tpu_custom_call.1} parent=1 // pred_check
      _
    $region3: #{tpu_custom_call.1} parent=1 // pred_check_branch
      %10 = sbr.rel (0) target = $region5
    $region4: #{tpu_custom_call.1} parent=1 // pred_region
      %s12 = ssub.s32 256, 256
      %13 = vsyncadd [#allocation3], %s12
      %s14 = sshll.u32 [#allocation2], 4
      %s15 = int_to_ptr.vmem [resolvable:$true] %s14
      %20 = dma.hbm_to_vmem [thread:$0]  %s0, 256, %s15, [#allocation3], 128, 128, 8
    $region5: #{tpu_custom_call.1} parent=1 // pred_fallthru
      _
    // Predicated region
    $region6: #{tpu_custom_call.1} parent=1 // pred_check
      _
    $region7: #{tpu_custom_call.1} parent=1 // pred_check_branch
      %22 = sbr.rel (0) target = $region9
    $region8: #{tpu_custom_call.1} parent=1 // pred_region
      _
    $region9: #{tpu_custom_call.1} parent=1 // pred_fallthru
      _
    // Predicated region
    $region10: #{tpu_custom_call.1} parent=1 // pred_check
      _
    $region11: #{tpu_custom_call.1} parent=1 // pred_check_branch
      %24 = sbr.rel (0) target = $region13
    $region12: #{tpu_custom_call.1} parent=1 // pred_region
      %25 = dma.done [#allocation3], 256
    $region13: #{tpu_custom_call.1} parent=1 // pred_fallthru
      _
    %v26 = vld [vmem:[#allocation2] sm:$0xff]
    %v27 = vld [vmem:[#allocation2 + $0x8] sm:$0xff]
    %v28 = vmul.f32 %v26, %v26
    %v29 = vmul.f32 %v27, %v27
    %vm30 = vcmask 261120
    %v31 = vsel %vm30, %v28, 0.0
    %32 = vadd.xlane.f32.xlu0 %v31
    %v33 = vpop.xlane.xlu0 %32
    %v34 = vsel %vm30, %v29, 0.0
    %35 = vadd.xlane.f32.xlu0 %v34
    %v36 = vpop.xlane.xlu0 %35
    %v37 = vrcp.pop 32.0
    %v38 = vmul.f32 %v33, %v37
    %v39 = vmul.f32 %v36, %v37
    %v40 = vadd.f32 %v38, 1e-06
    %v41 = vadd.f32 %v39, 1e-06
    %v42 = vrsqrt.pop %v40
    %v43 = vrsqrt.pop %v41
    %v44 = vmul.f32 %v26, %v42
    %v45 = vmul.f32 %v27, %v43
    %v46 = vld [vmem:[%s1] sm:$0x1]
    %v48 = vlaneseq
    %v49 = vshrl.u32 %v48, 7
    %v50 = vsub.s32 0, %v49
    %v51 = vrot.slane %v46, %v50
    %v53 = vmul.f32 %v51, %v44
    %v54 = vmul.f32 %v51, %v45
    %55 = vst.msk [vmem:[#allocation5] sm:$0xff] %vm30, %v53
    %56 = vst.msk [vmem:[#allocation5 + $0x8] sm:$0xff] %vm30, %v54
    // Predicated region
    $region14: #{tpu_custom_call.1} parent=1 // pred_check
      _
    $region15: #{tpu_custom_call.1} parent=1 // pred_check_branch
      %58 = sbr.rel (0) target = $region17
    $region16: #{tpu_custom_call.1} parent=1 // pred_region
      %s60 = ssub.s32 256, 256
      %61 = vsyncadd [#allocation4], %s60
      %s62 = sshll.u32 [#allocation5], 4
      %s63 = int_to_ptr.vmem [resolvable:$true] %s62
      %68 = dma.vmem_to_hbm [thread:$0]  %s63, 256, %s2, [#allocation4], 128, 128, 8
    $region17: #{tpu_custom_call.1} parent=1 // pred_fallthru
      _
    // Predicated region
    $region18: #{tpu_custom_call.1} parent=1 // pred_check
      _
    $region19: #{tpu_custom_call.1} parent=1 // pred_check_branch
      %70 = sbr.rel (0) target = $region21
    $region20: #{tpu_custom_call.1} parent=1 // pred_region
      %71 = dma.done [#allocation4], 256
    $region21: #{tpu_custom_call.1} parent=1 // pred_fallthru
      _
    %72 = vsyncpa [#allocation3], 1
    %73 = vsyncpa [#allocation4], 1

</llo_original>
